<compile_context>
chip_gen: v5e
topology: v5e:2x2
jax: 0.10.0
libtpu: 0.0.40
codegen_flags: <defaults>
</compile_context>

<pallas_src>
import functools

import jax
import jax.numpy as jnp
from jax import lax
from jax.experimental import pallas as pl
from jax.experimental.pallas import tpu as pltpu


def _focal_loss_kernel(pred_ref, tgt_ref, out_ref, acc_ref, *,
                       gamma, inv_total, n_rows, n_cols, tile_n, tile_c,
                       steps, full_row_tiles, mask_rows, mask_cols):
    j = pl.program_id(1)           # batch-tile step within this core
    c = pl.program_id(2)           # channel-tile step

    @pl.when((j == 0) & (c == 0))
    def _():
        acc_ref[...] = jnp.zeros_like(acc_ref)

    x = pred_ref[...].astype(jnp.float32)          # (tile_n, tile_c) logits
    t = tgt_ref[...]                               # (tile_n, 1) int32 class idx

    # One-hot membership (== torch scatter along dim=1); select, no convert+mul.
    col = c * tile_c + lax.broadcasted_iota(jnp.int32, x.shape, 1)
    is_pos = col == t

    # Numerically-stable BCE-with-logits (== F.binary_cross_entropy_with_logits).
    z = jnp.exp(-jnp.abs(x))                                            # EUP
    bce = jnp.maximum(x, 0.0) - jnp.where(is_pos, x, 0.0) + jnp.log1p(z)

    if gamma == 0.0:
        loss = bce
    else:
        # pt = exp(-bce) derived algebraically (no extra exp):
        #   exp(-bce) = exp(x*y - max(x,0)) / (1 + z), numerator is 1 or z.
        num = jnp.where(is_pos == (x > 0.0), 1.0, z)
        inv = pl.reciprocal(1.0 + z, approx=True)                       # EUP
        one_minus_pt = (1.0 + z - num) * inv
        ig = int(gamma)
        if float(ig) == float(gamma) and 0 < ig <= 8:
            # Integer gamma (common case gamma=2): plain multiplies, no exp/log.
            focal = one_minus_pt
            for _ in range(ig - 1):
                focal = focal * one_minus_pt
        else:
            # Non-integer gamma: guard log(0); where 1-pt==0, bce==0 anyway.
            focal = jnp.exp(gamma * jnp.log(jnp.maximum(one_minus_pt, 1e-30)))
        loss = focal * bce

    def _accumulate(vals):
        # Vreg-shaped accumulation: axis-0 sum of (tile_n//8, 8, tile_c) is pure
        # VPU adds; the single cross-lane reduction happens only at finalize.
        acc_ref[...] += vals.reshape(tile_n // 8, 8, tile_c).sum(axis=0)

    if mask_rows or mask_cols:
        tile_idx = pl.program_id(0) * steps + j
        conds = []
        if mask_rows:
            conds.append(tile_idx < full_row_tiles)
        if mask_cols:
            conds.append(c < pl.num_programs(2) - 1)
        is_full = functools.reduce(jnp.logical_and, conds)

        @pl.when(is_full)
        def _():
            _accumulate(loss)

        @pl.when(jnp.logical_not(is_full))
        def _():
            ok = None
            if mask_rows:
                row = tile_idx * tile_n + lax.broadcasted_iota(jnp.int32, x.shape, 0)
                ok = row < n_rows
            if mask_cols:
                cok = col < n_cols
                ok = cok if ok is None else jnp.logical_and(ok, cok)
            _accumulate(jnp.where(ok, loss, 0.0))
    else:
        _accumulate(loss)

    @pl.when((j == pl.num_programs(1) - 1) & (c == pl.num_programs(2) - 1))
    def _():
        out_ref[...] = (jnp.sum(acc_ref[...]) * inv_total).reshape(1, 1, 1)


def _round_up(a, b):
    return (a + b - 1) // b * b


def focal_loss(predict, target, gamma=0.0, tile_rows=None, tile_cols=None):
    """predict: (N, C) float logits; target: (N,) int class indices.

    Returns the scalar mean focal loss (matches FocalLoss(gamma).forward).
    """
    N, C = predict.shape
    assert target.shape == (N,)

    itemsize = jnp.dtype(predict.dtype).itemsize
    row_align = max(8, 32 // max(itemsize, 1))   # sublane packing of input dtype

    # ---- VMEM budget: 64 MiB limit on 128-MiB parts (v5e/v6e), 32 MiB on v7x.
    try:
        phys_vmem = int(pltpu.get_tpu_info().vmem_capacity_bytes)
    except Exception:
        phys_vmem = 64 * 1024 * 1024             # assume the smallest (v7x)
    vmem_limit = (64 if phys_vmem >= 128 * 1024 * 1024 else 32) * 1024 * 1024
    budget = vmem_limit - 8 * 1024 * 1024        # headroom for pipeline bookkeeping

    # ---- Channel tiling: full C if modest, else 8192-lane blocks (v7x guard).
    if tile_cols is not None:
        tile_c = int(tile_cols)
    elif C <= 8192:
        tile_c = C
    else:
        tile_c = 8192
    c_steps = pl.cdiv(C, tile_c)
    tile_c_pad = _round_up(tile_c, 128)          # lane footprint in VMEM
    acc_bytes = 8 * tile_c_pad * 4

    # ---- Batch tiling: byte-budgeted. Accounts for the predict double-buffer at
    # the input's itemsize plus the lane-padded (tile_n,1) target buffers
    # (~512 B/row each, double-buffered).
    if tile_rows is None:
        per_buf_cap = (8 if vmem_limit >= 64 * 1024 * 1024 else 4) * 1024 * 1024
        rows_a = per_buf_cap // (tile_c_pad * itemsize)
        rows_b = (budget - acc_bytes) // (2 * tile_c_pad * itemsize + 2 * 512)
        n_cap = max(row_align, (N // row_align) * row_align)
        tile_n = min(rows_a, rows_b, 8192, n_cap)
    else:
        tile_n = int(tile_rows)
    tile_n = max(row_align, (tile_n // row_align) * row_align)

    num_tiles = pl.cdiv(N, tile_n)
    # Always split the batch over 2 TensorCores when there is >1 tile (v7x);
    # serial & zero-cost on 1-TC v5e/v6e. Odd counts get one clamped+masked tile.
    p_split = 2 if num_tiles >= 2 else 1
    steps = pl.cdiv(num_tiles, p_split)
    clamp_idx = (p_split * steps) != num_tiles

    mask_rows = (p_split * steps * tile_n) != N
    mask_cols = (c_steps * tile_c) != C

    def _row_block(p, jj):
        idx = p * steps + jj
        if clamp_idx:
            idx = jnp.minimum(idx, num_tiles - 1)
        return idx

    tgt2d = target.astype(jnp.int32).reshape(N, 1)

    kernel = functools.partial(
        _focal_loss_kernel,
        gamma=float(gamma),
        inv_total=1.0 / float(N * C),
        n_rows=N,
        n_cols=C,
        tile_n=tile_n,
        tile_c=tile_c,
        steps=steps,
        full_row_tiles=N // tile_n,
        mask_rows=mask_rows,
        mask_cols=mask_cols,
    )

    partials = pl.pallas_call(
        kernel,
        out_shape=jax.ShapeDtypeStruct((p_split, 1, 1), jnp.float32),
        grid_spec=pltpu.PrefetchScalarGridSpec(
            num_scalar_prefetch=0,
            grid=(p_split, steps, c_steps),
            in_specs=[
                pl.BlockSpec((tile_n, tile_c), lambda p, jj, cc: (_row_block(p, jj), cc)),
                pl.BlockSpec((tile_n, 1), lambda p, jj, cc: (_row_block(p, jj), 0)),
            ],
            out_specs=pl.BlockSpec((1, 1, 1), lambda p, jj, cc: (p, 0, 0)),
            scratch_shapes=[pltpu.VMEM((8, tile_c), jnp.float32)],
        ),
        compiler_params=pltpu.CompilerParams(
            dimension_semantics=("parallel", "arbitrary", "arbitrary"),
            vmem_limit_bytes=vmem_limit,
        ),
    )(predict, tgt2d)
    # Combine the (up to 2) per-core partial means.
    return jnp.sum(partials)


def _focal_loss_ref(predict, target, gamma=0.0):
    """Pure-JAX reference (mirrors the PyTorch module)."""
    N, C = predict.shape
    one_hot = jax.nn.one_hot(target, C, dtype=jnp.float32)
    x = predict.astype(jnp.float32)
    bce = jnp.maximum(x, 0.0) - x * one_hot + jnp.log1p(jnp.exp(-jnp.abs(x)))
    pt = jnp.exp(-bce)
    loss = (1.0 - pt) ** gamma * bce
    return loss.mean()


if __name__ == "__main__":
    key = jax.random.PRNGKey(0)
    k1, k2, k3, k4 = jax.random.split(key, 4)

    # Case 1: gamma=2.0 (integer-gamma fast path), aligned single tile.
    N1, C1 = 16, 128
    p1 = jax.random.normal(k1, (N1, C1), dtype=jnp.float32)
    t1 = jax.random.randint(k2, (N1,), 0, C1, dtype=jnp.int32)
    o1 = jax.block_until_ready(focal_loss(p1, t1, gamma=2.0))
    r1 = _focal_loss_ref(p1, t1, gamma=2.0)
    assert jnp.allclose(o1, r1, rtol=1e-3, atol=1e-6), (o1, r1)

    # Case 2: gamma=0.5 (exp/log path), N not tile-aligned -> ragged last block
    # read straight from HBM (no wrapper pad) and masked in-kernel.
    N2, C2 = 20, 256
    p2 = jax.random.normal(k3, (N2, C2), dtype=jnp.float32)
    t2 = jax.random.randint(k4, (N2,), 0, C2, dtype=jnp.int32)
    o2 = jax.block_until_ready(focal_loss(p2, t2, gamma=0.5))
    r2 = _focal_loss_ref(p2, t2, gamma=0.5)
    assert jnp.allclose(o2, r2, rtol=1e-3, atol=1e-6), (o2, r2)

    # Case 3: gamma=0.0 (plain BCE mean), 4 tiles -> even 2-way core split.
    N3, C3 = 32, 128
    p3 = jax.random.normal(k1, (N3, C3), dtype=jnp.float32)
    t3 = jax.random.randint(k2, (N3,), 0, C3, dtype=jnp.int32)
    o3 = jax.block_until_ready(focal_loss(p3, t3, gamma=0.0, tile_rows=8))
    r3 = _focal_loss_ref(p3, t3, gamma=0.0)
    assert jnp.allclose(o3, r3, rtol=1e-3, atol=1e-6), (o3, r3)

    # Case 4: gamma=2.0, odd tile count (3 tiles on the 2-way split -> one
    # clamped+masked tile) and ragged channel tiling (tile_cols=128 over C=200).
    N4, C4 = 24, 200
    p4 = jax.random.normal(k3, (N4, C4), dtype=jnp.float32)
    t4 = jax.random.randint(k4, (N4,), 0, C4, dtype=jnp.int32)
    o4 = jax.block_until_ready(focal_loss(p4, t4, gamma=2.0, tile_rows=8, tile_cols=128))
    r4 = _focal_loss_ref(p4, t4, gamma=2.0)
    assert jnp.allclose(o4, r4, rtol=1e-3, atol=1e-6), (o4, r4)

    # Case 5: bf16 logits read in native dtype (half HBM traffic), default tiling.
    N5, C5 = 64, 256
    p5 = jax.random.normal(k1, (N5, C5), dtype=jnp.float32).astype(jnp.bfloat16)
    t5 = jax.random.randint(k2, (N5,), 0, C5, dtype=jnp.int32)
    o5 = jax.block_until_ready(focal_loss(p5, t5, gamma=2.0))
    r5 = _focal_loss_ref(p5, t5, gamma=2.0)
    assert jnp.allclose(o5, r5, rtol=1e-3, atol=1e-6), (o5, r5)

    print("KERNEL_OK")
</pallas_src>

<mosaic_0001>
module attributes {stable_mosaic.version = 11 : i64} {
  func.func @_focal_loss_kernel(%arg0: i32, %arg1: i32, %arg2: i32, %arg3: memref<16x128xf32, #tpu.memory_space<vmem>>, %arg4: memref<16x1xi32, #tpu.memory_space<vmem>>, %arg5: memref<1x1x1xf32, #tpu.memory_space<vmem>>, %arg6: memref<8x128xf32, #tpu.memory_space<vmem>>) attributes {dimension_semantics = [#tpu.dimension_semantics<parallel>, #tpu.dimension_semantics<arbitrary>, #tpu.dimension_semantics<arbitrary>], iteration_bounds = array<i64: 1, 1, 1>, scalar_prefetch = 0 : i64, scratch_operands = 1 : i64, tpu.core_type = #tpu.core_type<tc>, window_params = [{transform_indices = @transform_0, window_bounds = array<i64: 16, 128>}, {transform_indices = @transform_1, window_bounds = array<i64: 16, 1>}, {transform_indices = @transform_2, window_bounds = array<i64: 1, 1, 1>}]} {
    %c0_i32 = arith.constant 0 : i32
    %0 = arith.cmpi eq, %arg1, %c0_i32 : i32
    %c0_i32_0 = arith.constant 0 : i32
    %1 = arith.cmpi eq, %arg2, %c0_i32_0 : i32
    %2 = arith.andi %0, %1 : i1
    %3 = arith.extui %2 : i1 to i32
    %c0_i32_1 = arith.constant 0 : i32
    %4 = arith.cmpi ne, %3, %c0_i32_1 : i32
    scf.if %4 {
      %cst_20 = arith.constant 0.000000e+00 : f32
      %49 = vector.broadcast %cst_20 : f32 to vector<8x128xf32>
      %c0_21 = arith.constant 0 : index
      %c0_22 = arith.constant 0 : index
      %50 = vector.load %arg6[%c0_21, %c0_22] : memref<8x128xf32, #tpu.memory_space<vmem>>, vector<8x128xf32>
      tpu.vector_store %arg6[%c0_21, %c0_22], %49 {strides = array<i32>} : memref<8x128xf32, #tpu.memory_space<vmem>>, vector<8x128xf32>,
    } else {
    }
    %c0 = arith.constant 0 : index
    %c0_2 = arith.constant 0 : index
    %5 = vector.load %arg3[%c0, %c0_2] : memref<16x128xf32, #tpu.memory_space<vmem>>, vector<16x128xf32>
    %c0_3 = arith.constant 0 : index
    %c0_4 = arith.constant 0 : index
    %6 = vector.load %arg4[%c0_3, %c0_4] : memref<16x1xi32, #tpu.memory_space<vmem>>, vector<16x1xi32>
    %c128_i32 = arith.constant 128 : i32
    %7 = arith.muli %arg2, %c128_i32 : i32
    %8 = tpu.iota {dimensions = array<i32: 1>} : vector<16x128xi32>
    %9 = vector.broadcast %7 : i32 to vector<16x128xi32>
    %10 = arith.addi %9, %8 : vector<16x128xi32>
    %11 = vector.broadcast %6 : vector<16x1xi32> to vector<16x128xi32>
    %12 = arith.cmpi eq, %10, %11 : vector<16x128xi32>
    %13 = math.absf %5 : vector<16x128xf32>
    %cst = arith.constant 0.000000e+00 : f32
    %14 = vector.broadcast %cst : f32 to vector<16x128xf32>
    %15 = arith.subf %14, %13 : vector<16x128xf32>
    %16 = math.exp %15 : vector<16x128xf32>
    %cst_5 = arith.constant 0.000000e+00 : f32
    %17 = vector.broadcast %cst_5 : f32 to vector<16x128xf32>
    %18 = arith.maximumf %5, %17 : vector<16x128xf32>
    %cst_6 = arith.constant 0.000000e+00 : f32
    %19 = vector.broadcast %cst_6 : f32 to vector<16x128xf32>
    %20 = arith.select %12, %5, %19 : vector<16x128xi1>, vector<16x128xf32>
    %21 = arith.subf %18, %20 : vector<16x128xf32>
    %22 = math.log1p %16 : vector<16x128xf32>
    %23 = arith.addf %21, %22 : vector<16x128xf32>
    %cst_7 = arith.constant 0.000000e+00 : f32
    %24 = vector.broadcast %cst_7 : f32 to vector<16x128xf32>
    %25 = arith.cmpf ogt, %5, %24 : vector<16x128xf32>
    %26 = arith.xori %12, %25 : vector<16x128xi1>
    %cst_8 = arith.constant dense<true> : vector<16x128xi1>
    %27 = arith.xori %26, %cst_8 : vector<16x128xi1>
    %cst_9 = arith.constant 1.000000e+00 : f32
    %28 = vector.broadcast %cst_9 : f32 to vector<16x128xf32>
    %29 = arith.select %27, %28, %16 : vector<16x128xi1>, vector<16x128xf32>
    %cst_10 = arith.constant 1.000000e+00 : f32
    %30 = vector.broadcast %cst_10 : f32 to vector<16x128xf32>
    %31 = arith.addf %30, %16 : vector<16x128xf32>
    %32 = tpu.reciprocal %31 {approx = true} : vector<16x128xf32> -> vector<16x128xf32>
    %cst_11 = arith.constant 1.000000e+00 : f32
    %33 = vector.broadcast %cst_11 : f32 to vector<16x128xf32>
    %34 = arith.addf %33, %16 : vector<16x128xf32>
    %35 = arith.subf %34, %29 : vector<16x128xf32>
    %36 = arith.mulf %35, %32 : vector<16x128xf32>
    %37 = arith.mulf %36, %36 : vector<16x128xf32>
    %38 = arith.mulf %37, %23 : vector<16x128xf32>
    %c0_12 = arith.constant 0 : index
    %c0_13 = arith.constant 0 : index
    %39 = vector.load %arg6[%c0_12, %c0_13] : memref<8x128xf32, #tpu.memory_space<vmem>>, vector<8x128xf32>
    %40 = vector.shape_cast %38 : vector<16x128xf32> to vector<2x8x128xf32>
    %cst_14 = arith.constant dense<0.000000e+00> : vector<8x128xf32>
    %41 = vector.multi_reduction <add>, %40, %cst_14 [0] : vector<2x8x128xf32> to vector<8x128xf32>
    %42 = arith.addf %39, %41 : vector<8x128xf32>
    %c0_15 = arith.constant 0 : index
    %c0_16 = arith.constant 0 : index
    %43 = vector.load %arg6[%c0_15, %c0_16] : memref<8x128xf32, #tpu.memory_space<vmem>>, vector<8x128xf32>
    tpu.vector_store %arg6[%c0_15, %c0_16], %42 {strides = array<i32>} : memref<8x128xf32, #tpu.memory_space<vmem>>, vector<8x128xf32>,
    %c0_i32_17 = arith.constant 0 : i32
    %44 = arith.cmpi eq, %arg1, %c0_i32_17 : i32
    %c0_i32_18 = arith.constant 0 : i32
    %45 = arith.cmpi eq, %arg2, %c0_i32_18 : i32
    %46 = arith.andi %44, %45 : i1
    %47 = arith.extui %46 : i1 to i32
    %c0_i32_19 = arith.constant 0 : i32
    %48 = arith.cmpi ne, %47, %c0_i32_19 : i32
    scf.if %48 {
      %c0_20 = arith.constant 0 : index
      %c0_21 = arith.constant 0 : index
      %49 = vector.load %arg6[%c0_20, %c0_21] : memref<8x128xf32, #tpu.memory_space<vmem>>, vector<8x128xf32>
      %50 = vector.shape_cast %49 : vector<8x128xf32> to vector<1x8x128xf32>
      %cst_22 = arith.constant dense<0.000000e+00> : vector<1xf32>
      %51 = vector.multi_reduction <add>, %50, %cst_22 [1, 2] : vector<1x8x128xf32> to vector<1xf32>
      %52 = vector.shape_cast %51 : vector<1xf32> to vector<1x1x1xf32>
      %53 = vector.extract %52[0, 0, 0] : f32 from vector<1x1x1xf32>
      %cst_23 = arith.constant 4.8828125E-4 : f32
      %54 = arith.mulf %53, %cst_23 : f32
      %55 = vector.broadcast %54 : f32 to vector<1x1x1xf32>
      %c0_24 = arith.constant 0 : index
      %c0_25 = arith.constant 0 : index
      %c0_26 = arith.constant 0 : index
      %56 = vector.load %arg5[%c0_24, %c0_25, %c0_26] : memref<1x1x1xf32, #tpu.memory_space<vmem>>, vector<1x1x1xf32>
      tpu.vector_store %arg5[%c0_24, %c0_25, %c0_26], %55 {strides = array<i32>} : memref<1x1x1xf32, #tpu.memory_space<vmem>>, vector<1x1x1xf32>,
    } else {
    }
    return
  }
  func.func @transform_0(%arg0: i32, %arg1: i32, %arg2: i32) -> (i32, i32) {
    %c1_i32 = arith.constant 1 : i32
    %0 = arith.muli %arg0, %c1_i32 : i32
    %1 = arith.addi %0, %arg1 : i32
    %c0_i32 = arith.constant 0 : i32
    return %1, %arg2 : i32, i32
  }
  func.func @transform_1(%arg0: i32, %arg1: i32, %arg2: i32) -> (i32, i32) {
    %c1_i32 = arith.constant 1 : i32
    %0 = arith.muli %arg0, %c1_i32 : i32
    %1 = arith.addi %0, %arg1 : i32
    %c0_i32 = arith.constant 0 : i32
    %c0_i32_0 = arith.constant 0 : i32
    return %1, %c0_i32 : i32, i32
  }
  func.func @transform_2(%arg0: i32, %arg1: i32, %arg2: i32) -> (i32, i32, i32) {
    %c0_i32 = arith.constant 0 : i32
    %c0_i32_0 = arith.constant 0 : i32
    %c0_i32_1 = arith.constant 0 : i32
    return %arg0, %c0_i32, %c0_i32_0 : i32, i32, i32
  }
}

</mosaic_0001>

<llo_original>
// kernel: tpu_custom_call.1
$region0: #{tpu_custom_call.1}
  #allocation0 [shape = 'u32[]', space=smem, size = 0x4, offset = 0x4, fixed_abs, tag = 'smem constant byte address 0x4 - core index']
  #allocation1 [shape = 'u32[72,128]{1,0:T(1,128)}', space=vmem, size = 0x9000, scoped, tag = 'internal scratch']
  #allocation2 [shape = 'f32[8,128]{1,0:T(8,128)}', space=vmem, size = 0x1000, scoped, tag = 'scratch operand']
  %s0 = inlined_call_operand.vmem [shape: f32[16,128], index: 0, kind: input, shape index: {}]
  %s1 = inlined_call_operand.vmem [shape: s32[16,1], index: 1, kind: input, shape index: {}]
  %s2 = inlined_call_operand.hbm [shape: f32[1,1,1], index: 2, kind: output, shape index: {}]
  %s3 = sld [smem:[#allocation0]]
  $region26: #{tpu_custom_call.1} parent=0
    _
  %s5 = ssub.s32 1, %s3
  %s6 = scalar_select 0, %s5, %s3
  $region1: #{tpu_custom_call.1} parent=0
    #allocation3 [shape = 'u8[512]{0}', space=vmem, size = 0x400, scoped, tag = 'output window, operand 0, single buffered']
    #allocation4 [shape = 's32[1]{0}', space=sflag, size = 0x4, scoped, tag = 'scoped memory for tpu_custom_call.1']
    %7 = vsyncpa [#allocation4], 0
    // Predicated region
    $region2: #{tpu_custom_call.1} parent=1 // pred_check
      _
    $region3: #{tpu_custom_call.1} parent=1 // pred_check_branch
      %9 = sbr.rel (0) target = $region5
    $region4: #{tpu_custom_call.1} parent=1 // pred_region
      %s10 = sadd.s32 0, 0
      %s11 = smul.u32 2, %s10
      %p12 = scmp.lt.s32.totalorder %s11, 1
      %s13 = scalar_select %p12, %s11, 1
      %s14 = smul.addr %s13, 8
      %s15 = scalar_lea.vmem %s0, %s14
      %s16 = sadd.s32 0, 0
      %s17 = smul.u32 2, %s16
    $region5: #{tpu_custom_call.1} parent=1 // pred_fallthru
      _
    // Predicated region
    $region6: #{tpu_custom_call.1} parent=1 // pred_check
      _
    $region7: #{tpu_custom_call.1} parent=1 // pred_check_branch
      %19 = sbr.rel (0) target = $region9
    $region8: #{tpu_custom_call.1} parent=1 // pred_region
      %s20 = sadd.s32 0, 0
      %s21 = smul.u32 2, %s20
      %p22 = scmp.lt.s32.totalorder %s21, 1
      %s23 = scalar_select %p22, %s21, 1
      %s24 = smul.addr %s23, 8
      %s25 = scalar_lea.vmem %s1, %s24
      %s26 = sadd.s32 0, 0
      %s27 = smul.u32 2, %s26
    $region9: #{tpu_custom_call.1} parent=1 // pred_fallthru
      _
    %s28 = sadd.s32 0, 0
    %s29 = smul.u32 2, %s28
    %p30 = scmp.lt.s32.totalorder %s29, 1
    %s31 = scalar_select %p30, %s29, 1
    %s32 = smul.addr %s31, 8
    %s33 = scalar_lea.vmem %s0, %s32
    %s34 = sadd.s32 0, 0
    %s35 = smul.u32 2, %s34
    %p36 = scmp.lt.s32.totalorder %s35, 1
    %s37 = scalar_select %p36, %s35, 1
    %s38 = smul.addr %s37, 8
    %s39 = scalar_lea.vmem %s1, %s38
    %s40 = sadd.s32 0, 0
    %s41 = smul.u32 2, %s40
    %p42 = scmp.lt.s32.totalorder %s41, 1
    %s43 = scalar_select %p42, %s41, 1
    %s44 = smul.addr %s43, 8
    %s45 = scalar_lea.vmem %s0, %s44
    %s46 = sadd.s32 0, 0
    %s47 = smul.u32 2, %s46
    %s48 = sadd.s32 0, 0
    %s49 = smul.u32 2, %s48
    %p50 = scmp.lt.s32.totalorder %s49, 1
    %s51 = scalar_select %p50, %s49, 1
    %s52 = smul.addr %s51, 8
    %s53 = scalar_lea.vmem %s1, %s52
    %s54 = sadd.s32 0, 0
    %s55 = smul.u32 2, %s54
    %p56 = scmp.eq.s32.totalorder 0, 0
    %p57 = scmp.eq.s32.totalorder 0, 0
    %p58 = pnand %p56, %p57
    %p59 = pneg %p58
    // Predicated region
    $region10: #{tpu_custom_call.1} parent=1 // pred_check
      _
    $region11: #{tpu_custom_call.1} parent=1 // pred_check_branch
      %61 = sbr.rel (%p58) target = $region13
    $region12: #{tpu_custom_call.1} parent=1 // pred_region
      %62 = vst [vmem:[#allocation2] sm:$0xff] 0.0
    $region13: #{tpu_custom_call.1} parent=1 // pred_fallthru
      _
    %v63 = vld [vmem:[%s45] sm:$0xff]
    %v64 = vld [vmem:[%s45 + $0x8] sm:$0xff]
    %v65 = vld [vmem:[%s53] sm:$0xff]
    %v66 = vld [vmem:[%s53 + $0x8] sm:$0xff]
    %s67 = smul.u32 0, 128
    %v68 = vlaneseq
    %v69 = vand.u32 %v68, 127
    %v70 = vstv %s67
    %v71 = vadd.s32 %v70, %v69
    %72 = vset.pattern.permute.xlu0 0
    %73 = vperm.xlu0 %72, %v65
    %v74 = vpop.permute.xlu0 %73
    %75 = vset.pattern.permute.xlu0 0
    %76 = vperm.xlu0 %75, %v66
    %v77 = vpop.permute.xlu0 %76
    %vm78 = vcmp.eq.s32.totalorder %v71, %v74
    %vm79 = vcmp.eq.s32.totalorder %v71, %v77
    %v80 = vand.u32 2147483647, %v63
    %v81 = vand.u32 2147483647, %v64
    %v82 = vsub.f32 0.0, %v80
    %v83 = vsub.f32 0.0, %v81
    %v84 = vmul.f32 %v82, 1.442695
    %v85 = vpow.pop %v84
    %v86 = vmul.f32 %v83, 1.442695
    %v87 = vpow.pop %v86
    %v88 = vmax.f32 %v63, 0.0
    %v89 = vmax.f32 %v64, 0.0
    %v90 = vsel %vm78, %v63, 0.0
    %v91 = vsel %vm79, %v64, 0.0
    %v92 = vsub.f32 %v88, %v90
    %v93 = vsub.f32 %v89, %v91
    %v94 = vadd.f32 %v85, 1.0
    %v95 = vlog2.pop %v94
    %v96 = vmul.f32 %v95, 0.6931472
    %v97 = vmul.f32 -0.5, %v85
    %v98 = vadd.f32 %v97, 1.0
    %v99 = vmul.f32 %v98, %v85
    %v100 = vand.u32 2147483647, %v85
    %vm101 = vcmp.lt.f32.partialorder %v100, 0.0004427343
    %v102 = vsel %vm101, %v99, %v96
    %v103 = vadd.f32 %v87, 1.0
    %v104 = vlog2.pop %v103
    %v105 = vmul.f32 %v104, 0.6931472
    %v106 = vmul.f32 -0.5, %v87
    %v107 = vadd.f32 %v106, 1.0
    %v108 = vmul.f32 %v107, %v87
    %v109 = vand.u32 2147483647, %v87
    %vm110 = vcmp.lt.f32.partialorder %v109, 0.0004427343
    %v111 = vsel %vm110, %v108, %v105
    %v112 = vadd.f32 %v92, %v102
    %v113 = vadd.f32 %v93, %v111
    %vm114 = vcmp.gt.f32.partialorder %v63, 0.0
    %vm115 = vcmp.gt.f32.partialorder %v64, 0.0
    %vm116 = vmxor %vm78, %vm114
    %vm117 = vmxor %vm79, %vm115
    %vm118 = vmxor %vm116, 1
    %vm119 = vmxor %vm117, 1
    %v120 = vsel %vm118, 1.0, %v85
    %v121 = vsel %vm119, 1.0, %v87
    %v122 = vadd.f32 %v85, 1.0
    %v123 = vadd.f32 %v87, 1.0
    %v124 = vrcp.pop %v122
    %v125 = vrcp.pop %v123
    %v126 = vsub.f32 %v122, %v120
    %v127 = vsub.f32 %v123, %v121
    %v128 = vmul.f32 %v126, %v124
    %v129 = vmul.f32 %v127, %v125
    %v130 = vmul.f32 %v128, %v128
    %v131 = vmul.f32 %v129, %v129
    %v132 = vmul.f32 %v130, %v112
    %v133 = vmul.f32 %v131, %v113
    %v134 = vld [vmem:[#allocation2] sm:$0xff]
    %v135 = vadd.f32 %v132, %v133
    %v136 = vadd.f32 %v134, %v135
    %137 = vst [vmem:[#allocation2] sm:$0xff] %v136
    // Predicated region
    $region14: #{tpu_custom_call.1} parent=1 // pred_check
      _
    $region15: #{tpu_custom_call.1} parent=1 // pred_check_branch
      %139 = sbr.rel (%p58) target = $region17
    $region16: #{tpu_custom_call.1} parent=1 // pred_region
      %v140 = vld [vmem:[#allocation2] sm:$0xff]
      %141 = vadd.xlane.f32.xlu0 %v140
      %v142 = vpop.xlane.xlu0 %141
      %v143 = vrot.slane %v142, 4
      %v144 = vadd.f32 %v142, %v143
      %v145 = vrot.slane %v144, 2
      %v146 = vadd.f32 %v144, %v145
      %v147 = vrot.slane %v146, 1
      %v148 = vadd.f32 %v146, %v147
      %s149 = vtos %v148
      %s150 = smul.f32 %s149, 0.00048828125
      %v151 = vstv %s150
      %vm152 = vcmask 0
      %153 = vst.msk [vmem:[#allocation3] sm:$0x1] %vm152, %v151
    $region17: #{tpu_custom_call.1} parent=1 // pred_fallthru
      _
    // Predicated region
    $region18: #{tpu_custom_call.1} parent=1 // pred_check
      _
    $region19: #{tpu_custom_call.1} parent=1 // pred_check_branch
      %155 = sbr.rel (0) target = $region21
    $region20: #{tpu_custom_call.1} parent=1 // pred_region
      %157 = vsyncadd [#allocation4], 0
      %s159 = sshll.u32 [#allocation3], 4
      %s160 = int_to_ptr.vmem [resolvable:$true] %s159
      %s161 = sshll.u32 %s2, 4
      %s162 = int_to_ptr.hbm [resolvable:$true] %s161
      %164 = dma.vmem_to_hbm [thread:$0]  %s160, 16, %s162, [#allocation4]
    $region21: #{tpu_custom_call.1} parent=1 // pred_fallthru
      _
    // Predicated region
    $region22: #{tpu_custom_call.1} parent=1 // pred_check
      _
    $region23: #{tpu_custom_call.1} parent=1 // pred_check_branch
      %166 = sbr.rel (0) target = $region25
    $region24: #{tpu_custom_call.1} parent=1 // pred_region
      %168 = dma.done [#allocation4], 16
    $region25: #{tpu_custom_call.1} parent=1 // pred_fallthru
      _
    %169 = vsyncpa [#allocation4], 1

</llo_original>
